<compile_context>
chip_gen: v5e
topology: v5e:2x2
jax: 0.10.0
libtpu: 0.0.40
codegen_flags: <defaults>
</compile_context>

<pallas_src>
import jax
import jax.numpy as jnp
from jax import lax
from jax.experimental import pallas as pl
from jax.experimental.pallas import tpu as pltpu

HEAD_W = 8  # fused head rows: 4 action logits + 1 value + 3 padding sublanes


def actor_critic_kernel(xT_ref, w1T_ref, b1_ref, whT_ref, bh_ref, out_ref):
    # Hidden layer, transposed: (128, 8) @ (8, TB) -> hT (128, TB), + bias, ReLU.
    hT = jnp.dot(w1T_ref[...], xT_ref[...], preferred_element_type=jnp.float32)
    hT = jnp.maximum(hT + b1_ref[...], 0.0)          # b1 (128,1) broadcast over lanes

    # Fused heads: (8, 128) @ (128, TB) -> (8, TB).  Rows 0:3 = action logits,
    # row 4 = state value, rows 5:7 = zero-padded heads.
    headsT = jnp.dot(whT_ref[...], hT, preferred_element_type=jnp.float32)
    headsT = headsT + bh_ref[...]                    # bh (8,1) broadcast over lanes

    # Softmax over the 4 action rows (sublane axis).  Mask is a tiny (8,1)
    # sublane iota; masked rows become -inf so exp() zeros them out and they
    # do not contribute to the denominator.
    row = lax.broadcasted_iota(jnp.int32, (HEAD_W, 1), 0)
    act_mask = row < 4
    masked = jnp.where(act_mask, headsT, -jnp.inf)
    m = jnp.max(masked, axis=0, keepdims=True)       # (1, TB)
    e = jnp.exp(masked - m)
    probsT = e / jnp.sum(e, axis=0, keepdims=True)   # exact divide -> sums to 1

    # Single lane-dense packed store: rows 0:3 = probs, row 4 = value,
    # rows 5:7 = don't-care (discarded by the wrapper).
    out_ref[...] = jnp.where(act_mask, probsT, headsT)


def _round_up(x, m):
    return (x + m - 1) // m * m


def actor_critic_forward(state, params, *, tb_max=1024):
    """state: (B, 8) float32 -> (action_probs (B, 4), state_value (B, 1))."""
    w1, b1, wa, ba, wv, bv = params
    B = state.shape[0]
    H = w1.shape[1]  # 128

    # Fuse action / value heads into one packed weight & bias, then lay
    # everything out with batch on the lane (last) axis.
    w_heads = jnp.concatenate(
        [wa, wv, jnp.zeros((H, HEAD_W - 5), wa.dtype)], axis=1)   # (128, 8)
    b_heads = jnp.concatenate(
        [ba, bv, jnp.zeros((1, HEAD_W - 5), ba.dtype)], axis=1)   # (1, 8)

    w1T = w1.T                                # (128, 8)
    b1T = jnp.reshape(b1, (H, 1))             # (128, 1)
    whT = w_heads.T                           # (8, 128)
    bhT = jnp.reshape(b_heads, (HEAD_W, 1))   # (8, 1)
    xT = state.T                              # (8, B)

    # Lane-dense batch tiles: pad B (lane axis) to a multiple of 128, take the
    # biggest tile <= tb_max, and (if multiple steps) round to an even step
    # count so v7x's two TensorCores share the "parallel" axis evenly.
    # Padded columns run the softmax on bias-only logits -- harmless, they are
    # sliced off below; never reduce over them.
    tb_max = max(128, _round_up(tb_max, 128))
    padded_b = _round_up(B, 128)
    tb = min(tb_max, padded_b)
    n_steps = pl.cdiv(padded_b, tb)
    if n_steps > 1 and n_steps % 2 == 1:
        n_steps += 1                          # even split across v7x's 2 TCs
    padded_b = n_steps * tb
    if padded_b != B:
        xT = jnp.pad(xT, ((0, 0), (0, padded_b - B)))

    flops = 2 * padded_b * (8 * H + H * HEAD_W)
    bytes_accessed = 4 * (padded_b * (8 + HEAD_W) + H * 8 + H + HEAD_W * H + HEAD_W)
    cost = pl.CostEstimate(flops=flops,
                           transcendentals=HEAD_W * padded_b,
                           bytes_accessed=bytes_accessed)

    out = pl.pallas_call(
        actor_critic_kernel,
        out_shape=jax.ShapeDtypeStruct((HEAD_W, padded_b), jnp.float32),
        grid=(n_steps,),
        in_specs=[
            pl.BlockSpec((8, tb), lambda i: (0, i)),        # state^T tile (lane-dense)
            pl.BlockSpec((H, 8), lambda i: (0, 0)),         # affine weight (resident)
            pl.BlockSpec((H, 1), lambda i: (0, 0)),         # affine bias
            pl.BlockSpec((HEAD_W, H), lambda i: (0, 0)),    # fused head weight
            pl.BlockSpec((HEAD_W, 1), lambda i: (0, 0)),    # fused head bias
        ],
        out_specs=pl.BlockSpec((HEAD_W, tb), lambda i: (0, i)),  # lane-dense output
        compiler_params=pltpu.CompilerParams(
            dimension_semantics=("parallel",)),             # no-op on v5e/v6e (1 TC)
        cost_estimate=cost,
    )(xT, w1T, b1T, whT, bhT)

    probs = out[0:4, :B].T   # (B, 4)
    value = out[4:5, :B].T   # (B, 1)
    return probs, value


def init_params(key):
    """Deterministic init mimicking nn.Linear default (U[-1/sqrt(fan_in), +])."""
    k1, k2, k3, k4, k5, k6 = jax.random.split(key, 6)

    def uniform(k, shape, fan_in):
        bound = 1.0 / jnp.sqrt(jnp.float32(fan_in))
        return jax.random.uniform(k, shape, jnp.float32, -bound, bound)

    # Stored transposed relative to PyTorch: (in_features, out_features).
    w1 = uniform(k1, (8, 128), 8)       # affine.weight^T
    b1 = uniform(k2, (1, 128), 8)       # affine.bias
    wa = uniform(k3, (128, 4), 128)     # action_layer.weight^T
    ba = uniform(k4, (1, 4), 128)       # action_layer.bias
    wv = uniform(k5, (128, 1), 128)     # value_layer.weight^T
    bv = uniform(k6, (1, 1), 128)       # value_layer.bias
    return (w1, b1, wa, ba, wv, bv)


def reference_forward(state, params):
    w1, b1, wa, ba, wv, bv = params
    h = jnp.maximum(state @ w1 + b1, 0.0)
    v = h @ wv + bv
    logits = h @ wa + ba
    return jax.nn.softmax(logits, axis=-1), v


if __name__ == "__main__":
    key = jax.random.PRNGKey(0)
    pkey, skey = jax.random.split(key)

    params = init_params(pkey)
    # LunarLander observation: 8-dim state.  B=300 (non-multiple of 128)
    # exercises the lane-axis padding and the unpad/split/transpose wrapper;
    # after padding to 384 the kernel runs as a single grid step.
    B = 300
    state = jax.random.normal(skey, (B, 8), dtype=jnp.float32)

    probs, value = actor_critic_forward(state, params)
    jax.block_until_ready((probs, value))

    ref_probs, ref_value = reference_forward(state, params)
    assert probs.shape == (B, 4) and value.shape == (B, 1)
    assert jnp.allclose(probs, ref_probs, atol=2e-3, rtol=2e-3)
    assert jnp.allclose(value, ref_value, atol=2e-3, rtol=2e-3)
    # Exact divide in the kernel => probabilities normalize to f32 precision.
    assert jnp.allclose(jnp.sum(probs, axis=-1), 1.0, atol=1e-5)

    # TODO(synk): Categorical sampling / log_prob, UCB action selection and
    # calculateLoss are host-side RL bookkeeping, not forward tensor ops.
    print("KERNEL_OK")
</pallas_src>

<mosaic_0001>
module attributes {stable_mosaic.version = 11 : i64} {
  func.func @actor_critic_kernel(%arg0: i32, %arg1: memref<8x384xf32, #tpu.memory_space<vmem>>, %arg2: memref<128x8xf32, #tpu.memory_space<vmem>>, %arg3: memref<128x1xf32, #tpu.memory_space<vmem>>, %arg4: memref<8x128xf32, #tpu.memory_space<vmem>>, %arg5: memref<8x1xf32, #tpu.memory_space<vmem>>, %arg6: memref<8x384xf32, #tpu.memory_space<vmem>>) attributes {dimension_semantics = [#tpu.dimension_semantics<parallel>], iteration_bounds = array<i64: 1>, scalar_prefetch = 0 : i64, scratch_operands = 0 : i64, tpu.core_type = #tpu.core_type<tc>, window_params = [{transform_indices = @transform_0, window_bounds = array<i64: 8, 384>}, {pipeline_mode = #tpu.pipeline_mode<synchronous>, transform_indices = @transform_1, window_bounds = array<i64: 128, 8>}, {pipeline_mode = #tpu.pipeline_mode<synchronous>, transform_indices = @transform_2, window_bounds = array<i64: 128, 1>}, {pipeline_mode = #tpu.pipeline_mode<synchronous>, transform_indices = @transform_3, window_bounds = array<i64: 8, 128>}, {pipeline_mode = #tpu.pipeline_mode<synchronous>, transform_indices = @transform_4, window_bounds = array<i64: 8, 1>}, {transform_indices = @transform_5, window_bounds = array<i64: 8, 384>}]} {
    %c0 = arith.constant 0 : index
    %c0_0 = arith.constant 0 : index
    %0 = vector.load %arg2[%c0, %c0_0] : memref<128x8xf32, #tpu.memory_space<vmem>>, vector<128x8xf32>
    %c0_1 = arith.constant 0 : index
    %c0_2 = arith.constant 0 : index
    %1 = vector.load %arg1[%c0_1, %c0_2] : memref<8x384xf32, #tpu.memory_space<vmem>>, vector<8x384xf32>
    %cst = arith.constant dense<0.000000e+00> : vector<128x384xf32>
    %2 = tpu.matmul %0, %1, %cst {dimension_numbers = #tpu.dot_dimension_numbers<[1], [0], [0], [1], [0, 0, 1, 1], [], []>} : vector<128x8xf32>, vector<8x384xf32>, vector<128x384xf32> -> vector<128x384xf32>
    %c0_3 = arith.constant 0 : index
    %c0_4 = arith.constant 0 : index
    %3 = vector.load %arg3[%c0_3, %c0_4] : memref<128x1xf32, #tpu.memory_space<vmem>>, vector<128x1xf32>
    %4 = vector.broadcast %3 : vector<128x1xf32> to vector<128x384xf32>
    %5 = arith.addf %2, %4 : vector<128x384xf32>
    %cst_5 = arith.constant 0.000000e+00 : f32
    %6 = vector.broadcast %cst_5 : f32 to vector<128x384xf32>
    %7 = arith.maximumf %5, %6 : vector<128x384xf32>
    %c0_6 = arith.constant 0 : index
    %c0_7 = arith.constant 0 : index
    %8 = vector.load %arg4[%c0_6, %c0_7] : memref<8x128xf32, #tpu.memory_space<vmem>>, vector<8x128xf32>
    %cst_8 = arith.constant dense<0.000000e+00> : vector<8x384xf32>
    %9 = tpu.matmul %8, %7, %cst_8 {dimension_numbers = #tpu.dot_dimension_numbers<[1], [0], [0], [1], [0, 0, 1, 1], [], []>} : vector<8x128xf32>, vector<128x384xf32>, vector<8x384xf32> -> vector<8x384xf32>
    %c0_9 = arith.constant 0 : index
    %c0_10 = arith.constant 0 : index
    %10 = vector.load %arg5[%c0_9, %c0_10] : memref<8x1xf32, #tpu.memory_space<vmem>>, vector<8x1xf32>
    %11 = vector.broadcast %10 : vector<8x1xf32> to vector<8x384xf32>
    %12 = arith.addf %9, %11 : vector<8x384xf32>
    %13 = tpu.iota {dimensions = array<i32: 0>} : vector<8x1xi32>
    %c4_i32 = arith.constant 4 : i32
    %14 = vector.broadcast %c4_i32 : i32 to vector<8x1xi32>
    %15 = arith.cmpi slt, %13, %14 : vector<8x1xi32>
    %cst_11 = arith.constant 0xFF800000 : f32
    %16 = vector.shape_cast %15 : vector<8x1xi1> to vector<8x1xi1>
    %17 = vector.broadcast %16 : vector<8x1xi1> to vector<8x384xi1>
    %18 = vector.broadcast %cst_11 : f32 to vector<8x384xf32>
    %19 = arith.select %17, %12, %18 : vector<8x384xi1>, vector<8x384xf32>
    %cst_12 = arith.constant dense<0xFF800000> : vector<384xf32>
    %20 = vector.multi_reduction <maximumf>, %19, %cst_12 [0] : vector<8x384xf32> to vector<384xf32>
    %21 = vector.shape_cast %20 : vector<384xf32> to vector<1x384xf32>
    %22 = vector.broadcast %21 : vector<1x384xf32> to vector<8x384xf32>
    %23 = arith.subf %19, %22 : vector<8x384xf32>
    %24 = math.exp %23 : vector<8x384xf32>
    %cst_13 = arith.constant dense<0.000000e+00> : vector<384xf32>
    %25 = vector.multi_reduction <add>, %24, %cst_13 [0] : vector<8x384xf32> to vector<384xf32>
    %26 = vector.shape_cast %25 : vector<384xf32> to vector<1x384xf32>
    %27 = vector.broadcast %26 : vector<1x384xf32> to vector<8x384xf32>
    %28 = arith.divf %24, %27 : vector<8x384xf32>
    %29 = vector.shape_cast %15 : vector<8x1xi1> to vector<8x1xi1>
    %30 = vector.broadcast %29 : vector<8x1xi1> to vector<8x384xi1>
    %31 = arith.select %30, %28, %12 : vector<8x384xi1>, vector<8x384xf32>
    %c0_14 = arith.constant 0 : index
    %c0_15 = arith.constant 0 : index
    %32 = vector.load %arg6[%c0_14, %c0_15] : memref<8x384xf32, #tpu.memory_space<vmem>>, vector<8x384xf32>
    tpu.vector_store %arg6[%c0_14, %c0_15], %31 {strides = array<i32>} : memref<8x384xf32, #tpu.memory_space<vmem>>, vector<8x384xf32>,
    return
  }
  func.func @transform_0(%arg0: i32) -> (i32, i32) {
    %c0_i32 = arith.constant 0 : i32
    %c0_i32_0 = arith.constant 0 : i32
    return %c0_i32, %arg0 : i32, i32
  }
  func.func @transform_1(%arg0: i32) -> (i32, i32) {
    %c0_i32 = arith.constant 0 : i32
    %c0_i32_0 = arith.constant 0 : i32
    %c0_i32_1 = arith.constant 0 : i32
    return %c0_i32, %c0_i32_0 : i32, i32
  }
  func.func @transform_2(%arg0: i32) -> (i32, i32) {
    %c0_i32 = arith.constant 0 : i32
    %c0_i32_0 = arith.constant 0 : i32
    %c0_i32_1 = arith.constant 0 : i32
    return %c0_i32, %c0_i32_0 : i32, i32
  }
  func.func @transform_3(%arg0: i32) -> (i32, i32) {
    %c0_i32 = arith.constant 0 : i32
    %c0_i32_0 = arith.constant 0 : i32
    %c0_i32_1 = arith.constant 0 : i32
    return %c0_i32, %c0_i32_0 : i32, i32
  }
  func.func @transform_4(%arg0: i32) -> (i32, i32) {
    %c0_i32 = arith.constant 0 : i32
    %c0_i32_0 = arith.constant 0 : i32
    %c0_i32_1 = arith.constant 0 : i32
    return %c0_i32, %c0_i32_0 : i32, i32
  }
  func.func @transform_5(%arg0: i32) -> (i32, i32) {
    %c0_i32 = arith.constant 0 : i32
    %c0_i32_0 = arith.constant 0 : i32
    return %c0_i32, %arg0 : i32, i32
  }
}

</mosaic_0001>

<llo_original>
// kernel: tpu_custom_call.1
$region0: #{tpu_custom_call.1}
  #allocation0 [shape = 'u32[]', space=smem, size = 0x4, offset = 0x4, fixed_abs, tag = 'smem constant byte address 0x4 - core index']
  #allocation1 [shape = 'u32[72,128]{1,0:T(1,128)}', space=vmem, size = 0x9000, scoped, tag = 'internal scratch']
  %s0 = inlined_call_operand.vmem [shape: f32[8,384], index: 0, kind: input, shape index: {}]
  %s1 = inlined_call_operand.vmem [shape: f32[128,8], index: 1, kind: input, shape index: {}]
  %s2 = inlined_call_operand.vmem [shape: f32[128,1], index: 2, kind: input, shape index: {}]
  %s3 = inlined_call_operand.vmem [shape: f32[8,128], index: 3, kind: input, shape index: {}]
  %s4 = inlined_call_operand.vmem [shape: f32[8,1], index: 4, kind: input, shape index: {}]
  %s5 = inlined_call_operand.hbm [shape: f32[8,384], index: 5, kind: output, shape index: {}]
  %s6 = sld [smem:[#allocation0]]
  $region30: #{tpu_custom_call.1} parent=0
    _
  %s8 = ssub.s32 1, %s6
  %s9 = scalar_select 0, %s8, %s6
  $region1: #{tpu_custom_call.1} parent=0
    #allocation2 [shape = 'u8[12288]{0}', space=vmem, size = 0x3000, scoped, tag = 'output window, operand 0, single buffered']
    #allocation3 [shape = 's32[1]{0}', space=sflag, size = 0x4, scoped, tag = 'scoped memory for tpu_custom_call.1']
    %10 = vsyncpa [#allocation3], 0
    // Predicated region
    $region2: #{tpu_custom_call.1} parent=1 // pred_check
      _
    $region3: #{tpu_custom_call.1} parent=1 // pred_check_branch
      %12 = sbr.rel (0) target = $region5
    $region4: #{tpu_custom_call.1} parent=1 // pred_region
      _
    $region5: #{tpu_custom_call.1} parent=1 // pred_fallthru
      _
    // Predicated region
    $region6: #{tpu_custom_call.1} parent=1 // pred_check
      _
    $region7: #{tpu_custom_call.1} parent=1 // pred_check_branch
      %14 = sbr.rel (0) target = $region9
    $region8: #{tpu_custom_call.1} parent=1 // pred_region
      _
    $region9: #{tpu_custom_call.1} parent=1 // pred_fallthru
      _
    // Predicated region
    $region10: #{tpu_custom_call.1} parent=1 // pred_check
      _
    $region11: #{tpu_custom_call.1} parent=1 // pred_check_branch
      %16 = sbr.rel (0) target = $region13
    $region12: #{tpu_custom_call.1} parent=1 // pred_region
      _
    $region13: #{tpu_custom_call.1} parent=1 // pred_fallthru
      _
    // Predicated region
    $region14: #{tpu_custom_call.1} parent=1 // pred_check
      _
    $region15: #{tpu_custom_call.1} parent=1 // pred_check_branch
      %18 = sbr.rel (0) target = $region17
    $region16: #{tpu_custom_call.1} parent=1 // pred_region
      _
    $region17: #{tpu_custom_call.1} parent=1 // pred_fallthru
      _
    // Predicated region
    $region18: #{tpu_custom_call.1} parent=1 // pred_check
      _
    $region19: #{tpu_custom_call.1} parent=1 // pred_check_branch
      %20 = sbr.rel (0) target = $region21
    $region20: #{tpu_custom_call.1} parent=1 // pred_region
      _
    $region21: #{tpu_custom_call.1} parent=1 // pred_fallthru
      _
    %v21 = vld [vmem:[%s1] sm:$0xff]
    %v22 = vld [vmem:[%s1 + $0x8] sm:$0xff]
    %v23 = vld [vmem:[%s1 + $0x10] sm:$0xff]
    %v24 = vld [vmem:[%s1 + $0x18] sm:$0xff]
    %v25 = vld [vmem:[%s1 + $0x20] sm:$0xff]
    %v26 = vld [vmem:[%s1 + $0x28] sm:$0xff]
    %v27 = vld [vmem:[%s1 + $0x30] sm:$0xff]
    %v28 = vld [vmem:[%s1 + $0x38] sm:$0xff]
    %v29 = vld [vmem:[%s1 + $0x40] sm:$0xff]
    %v30 = vld [vmem:[%s1 + $0x48] sm:$0xff]
    %v31 = vld [vmem:[%s1 + $0x50] sm:$0xff]
    %v32 = vld [vmem:[%s1 + $0x58] sm:$0xff]
    %v33 = vld [vmem:[%s1 + $0x60] sm:$0xff]
    %v34 = vld [vmem:[%s1 + $0x68] sm:$0xff]
    %v35 = vld [vmem:[%s1 + $0x70] sm:$0xff]
    %v36 = vld [vmem:[%s1 + $0x78] sm:$0xff]
    %v37 = vld [vmem:[%s0] sm:$0xff]
    %v38 = vld [vmem:[%s0 + $0x8] sm:$0xff]
    %v39 = vld [vmem:[%s0 + $0x10] sm:$0xff]
    %v40 = vld [vmem:[%s2] sm:$0xff]
    %v41 = vld [vmem:[%s2 + $0x8] sm:$0xff]
    %v42 = vld [vmem:[%s2 + $0x10] sm:$0xff]
    %v43 = vld [vmem:[%s2 + $0x18] sm:$0xff]
    %v44 = vld [vmem:[%s2 + $0x20] sm:$0xff]
    %v45 = vld [vmem:[%s2 + $0x28] sm:$0xff]
    %v46 = vld [vmem:[%s2 + $0x30] sm:$0xff]
    %v47 = vld [vmem:[%s2 + $0x38] sm:$0xff]
    %v48 = vld [vmem:[%s2 + $0x40] sm:$0xff]
    %v49 = vld [vmem:[%s2 + $0x48] sm:$0xff]
    %v50 = vld [vmem:[%s2 + $0x50] sm:$0xff]
    %v51 = vld [vmem:[%s2 + $0x58] sm:$0xff]
    %v52 = vld [vmem:[%s2 + $0x60] sm:$0xff]
    %v53 = vld [vmem:[%s2 + $0x68] sm:$0xff]
    %v54 = vld [vmem:[%s2 + $0x70] sm:$0xff]
    %v55 = vld [vmem:[%s2 + $0x78] sm:$0xff]
    %57 = vset.pattern.permute.xlu0 0
    %58 = vperm.xlu0 %57, %v40
    %v59 = vpop.permute.xlu0 %58
    %62 = vset.pattern.permute.xlu0 0
    %63 = vperm.xlu0 %62, %v41
    %v64 = vpop.permute.xlu0 %63
    %67 = vset.pattern.permute.xlu0 0
    %68 = vperm.xlu0 %67, %v42
    %v69 = vpop.permute.xlu0 %68
    %72 = vset.pattern.permute.xlu0 0
    %73 = vperm.xlu0 %72, %v43
    %v74 = vpop.permute.xlu0 %73
    %77 = vset.pattern.permute.xlu0 0
    %78 = vperm.xlu0 %77, %v44
    %v79 = vpop.permute.xlu0 %78
    %82 = vset.pattern.permute.xlu0 0
    %83 = vperm.xlu0 %82, %v45
    %v84 = vpop.permute.xlu0 %83
    %87 = vset.pattern.permute.xlu0 0
    %88 = vperm.xlu0 %87, %v46
    %v89 = vpop.permute.xlu0 %88
    %92 = vset.pattern.permute.xlu0 0
    %93 = vperm.xlu0 %92, %v47
    %v94 = vpop.permute.xlu0 %93
    %97 = vset.pattern.permute.xlu0 0
    %98 = vperm.xlu0 %97, %v48
    %v99 = vpop.permute.xlu0 %98
    %102 = vset.pattern.permute.xlu0 0
    %103 = vperm.xlu0 %102, %v49
    %v104 = vpop.permute.xlu0 %103
    %107 = vset.pattern.permute.xlu0 0
    %108 = vperm.xlu0 %107, %v50
    %v109 = vpop.permute.xlu0 %108
    %112 = vset.pattern.permute.xlu0 0
    %113 = vperm.xlu0 %112, %v51
    %v114 = vpop.permute.xlu0 %113
    %117 = vset.pattern.permute.xlu0 0
    %118 = vperm.xlu0 %117, %v52
    %v119 = vpop.permute.xlu0 %118
    %122 = vset.pattern.permute.xlu0 0
    %123 = vperm.xlu0 %122, %v53
    %v124 = vpop.permute.xlu0 %123
    %127 = vset.pattern.permute.xlu0 0
    %128 = vperm.xlu0 %127, %v54
    %v129 = vpop.permute.xlu0 %128
    %132 = vset.pattern.permute.xlu0 0
    %133 = vperm.xlu0 %132, %v55
    %v134 = vpop.permute.xlu0 %133
    %vm136 = vcmask 64512
    %v138 = vsel %vm136, %v21, 0
    %v141 = vsel %vm136, %v22, 0
    %v144 = vsel %vm136, %v23, 0
    %v147 = vsel %vm136, %v24, 0
    %v150 = vsel %vm136, %v25, 0
    %v153 = vsel %vm136, %v26, 0
    %v156 = vsel %vm136, %v27, 0
    %v159 = vsel %vm136, %v28, 0
    %v162 = vsel %vm136, %v29, 0
    %v165 = vsel %vm136, %v30, 0
    %v168 = vsel %vm136, %v31, 0
    %v171 = vsel %vm136, %v32, 0
    %v174 = vsel %vm136, %v33, 0
    %v177 = vsel %vm136, %v34, 0
    %v180 = vsel %vm136, %v35, 0
    %v183 = vsel %vm136, %v36, 0
    %185 = vmatpush.msra.mxu0 0.0
    %186 = vmatpush.msra.mxu0 0.0
    %187 = vmatpush.msra.mxu0 0.0
    %188 = vmatpush.msra.mxu0 0.0
    %189 = vmatpush.msra.mxu0 0.0
    %190 = vmatpush.msra.mxu0 0.0
    %191 = vmatpush.msra.mxu0 0.0
    %192 = vmatpush.msra.mxu0 0.0
    %193 = vmatpush.msra.mxu0 0.0
    %194 = vmatpush.msra.mxu0 0.0
    %195 = vmatpush.msra.mxu0 0.0
    %196 = vmatpush.msra.mxu0 0.0
    %197 = vmatpush.msra.mxu0 0.0
    %198 = vmatpush.msra.mxu0 0.0
    %199 = vmatpush.msra.mxu0 0.0
    %200 = vmatpush.msra.mxu0 %v37
    %201 = vmatmul.f32.gmra.mxu0 %v138
    %v202 = vpop.f32.mrf.mxu0
    %v203 = vadd.f32 %v59, %v202
    %204 = vmatmul.f32.gmra.mxu0 %v141
    %v205 = vpop.f32.mrf.mxu0
    %v206 = vadd.f32 %v64, %v205
    %207 = vmatmul.f32.gmra.mxu0 %v144
    %v208 = vpop.f32.mrf.mxu0
    %v209 = vadd.f32 %v69, %v208
    %210 = vmatmul.f32.gmra.mxu0 %v147
    %v211 = vpop.f32.mrf.mxu0
    %v212 = vadd.f32 %v74, %v211
    %213 = vmatmul.f32.gmra.mxu0 %v150
    %v214 = vpop.f32.mrf.mxu0
    %v215 = vadd.f32 %v79, %v214
    %216 = vmatmul.f32.gmra.mxu0 %v153
    %v217 = vpop.f32.mrf.mxu0
    %v218 = vadd.f32 %v84, %v217
    %219 = vmatmul.f32.gmra.mxu0 %v156
    %v220 = vpop.f32.mrf.mxu0
    %v221 = vadd.f32 %v89, %v220
    %222 = vmatmul.f32.gmra.mxu0 %v159
    %v223 = vpop.f32.mrf.mxu0
    %v224 = vadd.f32 %v94, %v223
    %225 = vmatmul.f32.gmra.mxu0 %v162
    %v226 = vpop.f32.mrf.mxu0
    %v227 = vadd.f32 %v99, %v226
    %228 = vmatmul.f32.gmra.mxu0 %v165
    %v229 = vpop.f32.mrf.mxu0
    %v230 = vadd.f32 %v104, %v229
    %231 = vmatmul.f32.gmra.mxu0 %v168
    %v232 = vpop.f32.mrf.mxu0
    %v233 = vadd.f32 %v109, %v232
    %234 = vmatmul.f32.gmra.mxu0 %v171
    %v235 = vpop.f32.mrf.mxu0
    %v236 = vadd.f32 %v114, %v235
    %237 = vmatmul.f32.gmra.mxu0 %v174
    %v238 = vpop.f32.mrf.mxu0
    %v239 = vadd.f32 %v119, %v238
    %240 = vmatmul.f32.gmra.mxu0 %v177
    %v241 = vpop.f32.mrf.mxu0
    %v242 = vadd.f32 %v124, %v241
    %243 = vmatmul.f32.gmra.mxu0 %v180
    %v244 = vpop.f32.mrf.mxu0
    %v245 = vadd.f32 %v129, %v244
    %246 = vmatmul.f32.gmra.mxu0 %v183
    %v247 = vpop.f32.mrf.mxu0
    %v248 = vadd.f32 %v134, %v247
    %249 = vdwg.mxu0
    %250 = vmatpush.msra.mxu0 0.0
    %251 = vmatpush.msra.mxu0 0.0
    %252 = vmatpush.msra.mxu0 0.0
    %253 = vmatpush.msra.mxu0 0.0
    %254 = vmatpush.msra.mxu0 0.0
    %255 = vmatpush.msra.mxu0 0.0
    %256 = vmatpush.msra.mxu0 0.0
    %257 = vmatpush.msra.mxu0 0.0
    %258 = vmatpush.msra.mxu0 0.0
    %259 = vmatpush.msra.mxu0 0.0
    %260 = vmatpush.msra.mxu0 0.0
    %261 = vmatpush.msra.mxu0 0.0
    %262 = vmatpush.msra.mxu0 0.0
    %263 = vmatpush.msra.mxu0 0.0
    %264 = vmatpush.msra.mxu0 0.0
    %265 = vmatpush.msra.mxu0 %v38
    %266 = vmatmul.f32.gmra.mxu0 %v138
    %v267 = vpop.f32.mrf.mxu0
    %v268 = vadd.f32 %v59, %v267
    %269 = vmatmul.f32.gmra.mxu0 %v141
    %v270 = vpop.f32.mrf.mxu0
    %v271 = vadd.f32 %v64, %v270
    %272 = vmatmul.f32.gmra.mxu0 %v144
    %v273 = vpop.f32.mrf.mxu0
    %v274 = vadd.f32 %v69, %v273
    %275 = vmatmul.f32.gmra.mxu0 %v147
    %v276 = vpop.f32.mrf.mxu0
    %v277 = vadd.f32 %v74, %v276
    %278 = vmatmul.f32.gmra.mxu0 %v150
    %v279 = vpop.f32.mrf.mxu0
    %v280 = vadd.f32 %v79, %v279
    %281 = vmatmul.f32.gmra.mxu0 %v153
    %v282 = vpop.f32.mrf.mxu0
    %v283 = vadd.f32 %v84, %v282
    %284 = vmatmul.f32.gmra.mxu0 %v156
    %v285 = vpop.f32.mrf.mxu0
    %v286 = vadd.f32 %v89, %v285
    %287 = vmatmul.f32.gmra.mxu0 %v159
    %v288 = vpop.f32.mrf.mxu0
    %v289 = vadd.f32 %v94, %v288
    %290 = vmatmul.f32.gmra.mxu0 %v162
    %v291 = vpop.f32.mrf.mxu0
    %v292 = vadd.f32 %v99, %v291
    %293 = vmatmul.f32.gmra.mxu0 %v165
    %v294 = vpop.f32.mrf.mxu0
    %v295 = vadd.f32 %v104, %v294
    %296 = vmatmul.f32.gmra.mxu0 %v168
    %v297 = vpop.f32.mrf.mxu0
    %v298 = vadd.f32 %v109, %v297
    %299 = vmatmul.f32.gmra.mxu0 %v171
    %v300 = vpop.f32.mrf.mxu0
    %v301 = vadd.f32 %v114, %v300
    %302 = vmatmul.f32.gmra.mxu0 %v174
    %v303 = vpop.f32.mrf.mxu0
    %v304 = vadd.f32 %v119, %v303
    %305 = vmatmul.f32.gmra.mxu0 %v177
    %v306 = vpop.f32.mrf.mxu0
    %v307 = vadd.f32 %v124, %v306
    %308 = vmatmul.f32.gmra.mxu0 %v180
    %v309 = vpop.f32.mrf.mxu0
    %v310 = vadd.f32 %v129, %v309
    %311 = vmatmul.f32.gmra.mxu0 %v183
    %v312 = vpop.f32.mrf.mxu0
    %v313 = vadd.f32 %v134, %v312
    %314 = vdwg.mxu0
    %315 = vmatpush.msra.mxu0 0.0
    %316 = vmatpush.msra.mxu0 0.0
    %317 = vmatpush.msra.mxu0 0.0
    %318 = vmatpush.msra.mxu0 0.0
    %319 = vmatpush.msra.mxu0 0.0
    %320 = vmatpush.msra.mxu0 0.0
    %321 = vmatpush.msra.mxu0 0.0
    %322 = vmatpush.msra.mxu0 0.0
    %323 = vmatpush.msra.mxu0 0.0
    %324 = vmatpush.msra.mxu0 0.0
    %325 = vmatpush.msra.mxu0 0.0
    %326 = vmatpush.msra.mxu0 0.0
    %327 = vmatpush.msra.mxu0 0.0
    %328 = vmatpush.msra.mxu0 0.0
    %329 = vmatpush.msra.mxu0 0.0
    %330 = vmatpush.msra.mxu0 %v39
    %331 = vmatmul.f32.gmra.mxu0 %v138
    %v332 = vpop.f32.mrf.mxu0
    %v333 = vadd.f32 %v59, %v332
    %334 = vmatmul.f32.gmra.mxu0 %v141
    %v335 = vpop.f32.mrf.mxu0
    %v336 = vadd.f32 %v64, %v335
    %337 = vmatmul.f32.gmra.mxu0 %v144
    %v338 = vpop.f32.mrf.mxu0
    %v339 = vadd.f32 %v69, %v338
    %340 = vmatmul.f32.gmra.mxu0 %v147
    %v341 = vpop.f32.mrf.mxu0
    %v342 = vadd.f32 %v74, %v341
    %343 = vmatmul.f32.gmra.mxu0 %v150
    %v344 = vpop.f32.mrf.mxu0
    %v345 = vadd.f32 %v79, %v344
    %346 = vmatmul.f32.gmra.mxu0 %v153
    %v347 = vpop.f32.mrf.mxu0
    %v348 = vadd.f32 %v84, %v347
    %349 = vmatmul.f32.gmra.mxu0 %v156
    %v350 = vpop.f32.mrf.mxu0
    %v351 = vadd.f32 %v89, %v350
    %352 = vmatmul.f32.gmra.mxu0 %v159
    %v353 = vpop.f32.mrf.mxu0
    %v354 = vadd.f32 %v94, %v353
    %355 = vmatmul.f32.gmra.mxu0 %v162
    %v356 = vpop.f32.mrf.mxu0
    %v357 = vadd.f32 %v99, %v356
    %358 = vmatmul.f32.gmra.mxu0 %v165
    %v359 = vpop.f32.mrf.mxu0
    %v360 = vadd.f32 %v104, %v359
    %361 = vmatmul.f32.gmra.mxu0 %v168
    %v362 = vpop.f32.mrf.mxu0
    %v363 = vadd.f32 %v109, %v362
    %364 = vmatmul.f32.gmra.mxu0 %v171
    %v365 = vpop.f32.mrf.mxu0
    %v366 = vadd.f32 %v114, %v365
    %367 = vmatmul.f32.gmra.mxu0 %v174
    %v368 = vpop.f32.mrf.mxu0
    %v369 = vadd.f32 %v119, %v368
    %370 = vmatmul.f32.gmra.mxu0 %v177
    %v371 = vpop.f32.mrf.mxu0
    %v372 = vadd.f32 %v124, %v371
    %373 = vmatmul.f32.gmra.mxu0 %v180
    %v374 = vpop.f32.mrf.mxu0
    %v375 = vadd.f32 %v129, %v374
    %376 = vmatmul.f32.gmra.mxu0 %v183
    %v377 = vpop.f32.mrf.mxu0
    %v378 = vadd.f32 %v134, %v377
    %379 = vdwg.mxu0
    %v380 = vmax.f32 %v203, 0.0
    %v381 = vmax.f32 %v268, 0.0
    %v382 = vmax.f32 %v333, 0.0
    %v383 = vmax.f32 %v206, 0.0
    %v384 = vmax.f32 %v271, 0.0
    %v385 = vmax.f32 %v336, 0.0
    %v386 = vmax.f32 %v209, 0.0
    %v387 = vmax.f32 %v274, 0.0
    %v388 = vmax.f32 %v339, 0.0
    %v389 = vmax.f32 %v212, 0.0
    %v390 = vmax.f32 %v277, 0.0
    %v391 = vmax.f32 %v342, 0.0
    %v392 = vmax.f32 %v215, 0.0
    %v393 = vmax.f32 %v280, 0.0
    %v394 = vmax.f32 %v345, 0.0
    %v395 = vmax.f32 %v218, 0.0
    %v396 = vmax.f32 %v283, 0.0
    %v397 = vmax.f32 %v348, 0.0
    %v398 = vmax.f32 %v221, 0.0
    %v399 = vmax.f32 %v286, 0.0
    %v400 = vmax.f32 %v351, 0.0
    %v401 = vmax.f32 %v224, 0.0
    %v402 = vmax.f32 %v289, 0.0
    %v403 = vmax.f32 %v354, 0.0
    %v404 = vmax.f32 %v227, 0.0
    %v405 = vmax.f32 %v292, 0.0
    %v406 = vmax.f32 %v357, 0.0
    %v407 = vmax.f32 %v230, 0.0
    %v408 = vmax.f32 %v295, 0.0
    %v409 = vmax.f32 %v360, 0.0
    %v410 = vmax.f32 %v233, 0.0
    %v411 = vmax.f32 %v298, 0.0
    %v412 = vmax.f32 %v363, 0.0
    %v413 = vmax.f32 %v236, 0.0
    %v414 = vmax.f32 %v301, 0.0
    %v415 = vmax.f32 %v366, 0.0
    %v416 = vmax.f32 %v239, 0.0
    %v417 = vmax.f32 %v304, 0.0
    %v418 = vmax.f32 %v369, 0.0
    %v419 = vmax.f32 %v242, 0.0
    %v420 = vmax.f32 %v307, 0.0
    %v421 = vmax.f32 %v372, 0.0
    %v422 = vmax.f32 %v245, 0.0
    %v423 = vmax.f32 %v310, 0.0
    %v424 = vmax.f32 %v375, 0.0
    %v425 = vmax.f32 %v248, 0.0
    %v426 = vmax.f32 %v313, 0.0
    %v427 = vmax.f32 %v378, 0.0
    %v428 = vld [vmem:[%s3] sm:$0xff]
    %v429 = vld [vmem:[%s4] sm:$0xff]
    %431 = vset.pattern.permute.xlu0 0
    %432 = vperm.xlu0 %431, %v429
    %v433 = vpop.permute.xlu0 %432
    %435 = vmatpush.msra.mxu0 %v425
    %436 = vmatpush.msra.mxu0 %v422
    %437 = vmatpush.msra.mxu0 %v419
    %438 = vmatpush.msra.mxu0 %v416
    %439 = vmatpush.msra.mxu0 %v413
    %440 = vmatpush.msra.mxu0 %v410
    %441 = vmatpush.msra.mxu0 %v407
    %442 = vmatpush.msra.mxu0 %v404
    %443 = vmatpush.msra.mxu0 %v401
    %444 = vmatpush.msra.mxu0 %v398
    %445 = vmatpush.msra.mxu0 %v395
    %446 = vmatpush.msra.mxu0 %v392
    %447 = vmatpush.msra.mxu0 %v389
    %448 = vmatpush.msra.mxu0 %v386
    %449 = vmatpush.msra.mxu0 %v383
    %450 = vmatpush.msra.mxu0 %v380
    %451 = vmatmul.f32.gmra.mxu0 %v428
    %v452 = vpop.f32.mrf.mxu0
    %v453 = vadd.f32 %v433, %v452
    %454 = vdwg.mxu0
    %455 = vmatpush.msra.mxu0 %v426
    %456 = vmatpush.msra.mxu0 %v423
    %457 = vmatpush.msra.mxu0 %v420
    %458 = vmatpush.msra.mxu0 %v417
    %459 = vmatpush.msra.mxu0 %v414
    %460 = vmatpush.msra.mxu0 %v411
    %461 = vmatpush.msra.mxu0 %v408
    %462 = vmatpush.msra.mxu0 %v405
    %463 = vmatpush.msra.mxu0 %v402
    %464 = vmatpush.msra.mxu0 %v399
    %465 = vmatpush.msra.mxu0 %v396
    %466 = vmatpush.msra.mxu0 %v393
    %467 = vmatpush.msra.mxu0 %v390
    %468 = vmatpush.msra.mxu0 %v387
    %469 = vmatpush.msra.mxu0 %v384
    %470 = vmatpush.msra.mxu0 %v381
    %471 = vmatmul.f32.gmra.mxu0 %v428
    %v472 = vpop.f32.mrf.mxu0
    %v473 = vadd.f32 %v433, %v472
    %474 = vdwg.mxu0
    %475 = vmatpush.msra.mxu0 %v427
    %476 = vmatpush.msra.mxu0 %v424
    %477 = vmatpush.msra.mxu0 %v421
    %478 = vmatpush.msra.mxu0 %v418
    %479 = vmatpush.msra.mxu0 %v415
    %480 = vmatpush.msra.mxu0 %v412
    %481 = vmatpush.msra.mxu0 %v409
    %482 = vmatpush.msra.mxu0 %v406
    %483 = vmatpush.msra.mxu0 %v403
    %484 = vmatpush.msra.mxu0 %v400
    %485 = vmatpush.msra.mxu0 %v397
    %486 = vmatpush.msra.mxu0 %v394
    %487 = vmatpush.msra.mxu0 %v391
    %488 = vmatpush.msra.mxu0 %v388
    %489 = vmatpush.msra.mxu0 %v385
    %490 = vmatpush.msra.mxu0 %v382
    %491 = vmatmul.f32.gmra.mxu0 %v428
    %v492 = vpop.f32.mrf.mxu0
    %v493 = vadd.f32 %v433, %v492
    %494 = vdwg.mxu0
    %v495 = vlaneseq
    %v496 = vshrl.u32 %v495, 7
    %vm497 = vcmp.lt.s32.totalorder %v496, 4
    %v498 = vsel %vm497, 1, 0
    %vm499 = vcmp.eq.s32.totalorder %v498, 1
    %v500 = vsel %vm499, %v453, -inf
    %v501 = vsel %vm499, %v473, -inf
    %v502 = vsel %vm499, %v493, -inf
    %v503 = vrot.slane %v500, 4
    %v504 = vmax.f32 %v500, %v503
    %v505 = vrot.slane %v504, 2
    %v506 = vmax.f32 %v504, %v505
    %v507 = vrot.slane %v506, 1
    %v508 = vmax.f32 %v506, %v507
    %v509 = vrot.slane %v501, 4
    %v510 = vmax.f32 %v501, %v509
    %v511 = vrot.slane %v510, 2
    %v512 = vmax.f32 %v510, %v511
    %v513 = vrot.slane %v512, 1
    %v514 = vmax.f32 %v512, %v513
    %v515 = vrot.slane %v502, 4
    %v516 = vmax.f32 %v502, %v515
    %v517 = vrot.slane %v516, 2
    %v518 = vmax.f32 %v516, %v517
    %v519 = vrot.slane %v518, 1
    %v520 = vmax.f32 %v518, %v519
    %v521 = vsub.f32 %v500, %v508
    %v522 = vsub.f32 %v501, %v514
    %v523 = vsub.f32 %v502, %v520
    %v524 = vmul.f32 %v521, 1.442695
    %v525 = vpow.pop %v524
    %v526 = vmul.f32 %v522, 1.442695
    %v527 = vpow.pop %v526
    %v528 = vmul.f32 %v523, 1.442695
    %v529 = vpow.pop %v528
    %v530 = vrot.slane %v525, 4
    %v531 = vadd.f32 %v525, %v530
    %v532 = vrot.slane %v531, 2
    %v533 = vadd.f32 %v531, %v532
    %v534 = vrot.slane %v533, 1
    %v535 = vadd.f32 %v533, %v534
    %v536 = vrot.slane %v527, 4
    %v537 = vadd.f32 %v527, %v536
    %v538 = vrot.slane %v537, 2
    %v539 = vadd.f32 %v537, %v538
    %v540 = vrot.slane %v539, 1
    %v541 = vadd.f32 %v539, %v540
    %v542 = vrot.slane %v529, 4
    %v543 = vadd.f32 %v529, %v542
    %v544 = vrot.slane %v543, 2
    %v545 = vadd.f32 %v543, %v544
    %v546 = vrot.slane %v545, 1
    %v547 = vadd.f32 %v545, %v546
    %v548 = vrcp.pop %v535
    %v549 = vmul.f32 %v535, %v548
    %v550 = vsub.f32 1.0, %v549
    %v551 = vmul.f32 %v548, %v550
    %v552 = vadd.f32 %v548, %v551
    %vm553 = vweird.f32 %v535
    %vm554 = vweird.f32 %v548
    %vm555 = vmor %vm553, %vm554
    %v556 = vsel %vm555, %v548, %v552
    %v557 = vand.u32 2147483647, %v535
    %vm558 = vcmp.eq.f32.partialorder %v557, 8.507059e+37
    %v559 = vand.u32 %v535, 2147483648
    %v560 = vor.u32 1.1754944e-38, %v559
    %v561 = vsel %vm558, %v560, %v556
    %v562 = vmul.f32 %v525, %v561
    %v563 = vrcp.pop %v541
    %v564 = vmul.f32 %v541, %v563
    %v565 = vsub.f32 1.0, %v564
    %v566 = vmul.f32 %v563, %v565
    %v567 = vadd.f32 %v563, %v566
    %vm568 = vweird.f32 %v541
    %vm569 = vweird.f32 %v563
    %vm570 = vmor %vm568, %vm569
    %v571 = vsel %vm570, %v563, %v567
    %v572 = vand.u32 2147483647, %v541
    %vm573 = vcmp.eq.f32.partialorder %v572, 8.507059e+37
    %v574 = vand.u32 %v541, 2147483648
    %v575 = vor.u32 1.1754944e-38, %v574
    %v576 = vsel %vm573, %v575, %v571
    %v577 = vmul.f32 %v527, %v576
    %v578 = vrcp.pop %v547
    %v579 = vmul.f32 %v547, %v578
    %v580 = vsub.f32 1.0, %v579
    %v581 = vmul.f32 %v578, %v580
    %v582 = vadd.f32 %v578, %v581
    %vm583 = vweird.f32 %v547
    %vm584 = vweird.f32 %v578
    %vm585 = vmor %vm583, %vm584
    %v586 = vsel %vm585, %v578, %v582
    %v587 = vand.u32 2147483647, %v547
    %vm588 = vcmp.eq.f32.partialorder %v587, 8.507059e+37
    %v589 = vand.u32 %v547, 2147483648
    %v590 = vor.u32 1.1754944e-38, %v589
    %v591 = vsel %vm588, %v590, %v586
    %v592 = vmul.f32 %v529, %v591
    %v593 = vsel %vm499, %v562, %v453
    %v594 = vsel %vm499, %v577, %v473
    %v595 = vsel %vm499, %v592, %v493
    %596 = vst [vmem:[#allocation2] sm:$0xff] %v593
    %597 = vst [vmem:[#allocation2 + $0x8] sm:$0xff] %v594
    %598 = vst [vmem:[#allocation2 + $0x10] sm:$0xff] %v595
    // Predicated region
    $region22: #{tpu_custom_call.1} parent=1 // pred_check
      _
    $region23: #{tpu_custom_call.1} parent=1 // pred_check_branch
      %600 = sbr.rel (0) target = $region25
    $region24: #{tpu_custom_call.1} parent=1 // pred_region
      %602 = vsyncadd [#allocation3], 0
      %s604 = sshll.u32 [#allocation2], 4
      %s605 = int_to_ptr.vmem [resolvable:$true] %s604
      %s606 = sshll.u32 %s5, 4
      %s607 = int_to_ptr.hbm [resolvable:$true] %s606
      %609 = dma.vmem_to_hbm [thread:$0]  %s605, 384, %s607, [#allocation3]
    $region25: #{tpu_custom_call.1} parent=1 // pred_fallthru
      _
    // Predicated region
    $region26: #{tpu_custom_call.1} parent=1 // pred_check
      _
    $region27: #{tpu_custom_call.1} parent=1 // pred_check_branch
      %611 = sbr.rel (0) target = $region29
    $region28: #{tpu_custom_call.1} parent=1 // pred_region
      %613 = dma.done [#allocation3], 384
    $region29: #{tpu_custom_call.1} parent=1 // pred_fallthru
      _
    %614 = vsyncpa [#allocation3], 1

</llo_original>
